<compile_context>
chip_gen: v7x
topology: tpu7x:2x2x1
jax: 0.10.0
libtpu: 0.0.40
codegen_flags: <defaults>
</compile_context>

<pallas_src>
import jax
import jax.numpy as jnp
from jax.experimental import pallas as pl
from jax.experimental.pallas import tpu as pltpu


def _normalize_kernel(x_ref, mean_ref, scale_ref, o_ref):
    # x_ref / o_ref: (bn, C, bl) tiles (sublane = channel, lane = spatial).
    # mean_ref / scale_ref: (1, C, 1) f32 per-channel constants (resident).
    x = x_ref[...].astype(jnp.float32)
    o_ref[...] = ((x - mean_ref[...]) * scale_ref[...]).astype(o_ref.dtype)


def _dimension_semantics(grid):
    """All axes parallel; on v7x shard the largest axis across both TensorCores."""
    par = getattr(pltpu, "PARALLEL", "parallel")
    sems = [par] * len(grid)
    core_par = getattr(pltpu, "CORE_PARALLEL", None)
    try:
        kind = jax.devices()[0].device_kind.lower()
    except Exception:
        kind = ""
    if core_par is not None and ("v7" in kind or "7x" in kind):
        ax = max(range(len(grid)), key=lambda a: grid[a])
        if grid[ax] > 1:
            sems[ax] = core_par
    return tuple(sems)


def normalize(x, mean, std, *, target_block_bytes=2 * 1024 * 1024):
    """x: (N, C, H, W); mean, std: (C,).  Returns (x - mean)/std per channel.

    `target_block_bytes` = padded VMEM footprint of one tile of one buffer;
    total VMEM use is ~4x that (double-buffered input + output).
    """
    N, C, H, W = x.shape
    L = H * W
    itemsize = jnp.dtype(x.dtype).itemsize
    mean = jnp.asarray(mean)
    std = jnp.asarray(std)

    # Sublane padding of the channel axis in VMEM (8 f32, 16 bf16, 32 int8).
    # Only affects the VMEM budget, never the HBM traffic.
    sublane = max(8, 32 // itemsize)
    padded_c = -(-C // sublane) * sublane

    # Free reshape (collapses trailing contiguous dims; no data movement).
    x3 = x.reshape(N, C, L)

    # Hoist the divide; keep constants in f32 so low-precision inputs are
    # normalized in full precision inside the kernel.
    # (std == 0 yields inf, exactly like the PyTorch reference divide.)
    mean3 = mean.astype(jnp.float32).reshape(1, C, 1)
    scale3 = (1.0 / std.astype(jnp.float32)).reshape(1, C, 1)

    # ---- Tile selection --------------------------------------------------
    row_bytes = padded_c * L * itemsize          # one batch row, full L, padded
    if row_bytes <= target_block_bytes:
        bl = L                                   # full spatial extent in lanes
        bn = min(N, max(1, target_block_bytes // row_bytes))
        if N % bn:                               # prefer an unragged final tile
            for d in range(bn, 0, -1):
                if N % d == 0:
                    if 2 * d >= bn:              # only if tile stays >= half size
                        bn = d
                    break
    else:
        # Large spatial size: chunk H*W into lane blocks (multiples of 128).
        bn = 1
        lane_budget = max(128, target_block_bytes // (padded_c * itemsize))
        bl0 = max(128, (lane_budget // 128) * 128)
        bl = bl0
        while bl >= 256 and L % bl:
            bl -= 128
        if L % bl:
            bl = bl0                             # accept one ragged lane chunk
        bl = min(bl, L)

    grid = (pl.cdiv(N, bn), pl.cdiv(L, bl))

    nbytes = x.size * itemsize
    cost = pl.CostEstimate(
        flops=2 * x.size,                        # one sub + one mul per element
        transcendentals=0,
        bytes_accessed=2 * nbytes + 2 * C * 4,   # read x + write out (+ consts)
    )

    out3 = pl.pallas_call(
        _normalize_kernel,
        out_shape=jax.ShapeDtypeStruct((N, C, L), x.dtype),
        grid=grid,
        in_specs=[
            pl.BlockSpec((bn, C, bl), lambda i, j: (i, 0, j)),
            pl.BlockSpec((1, C, 1), lambda i, j: (0, 0, 0)),   # resident consts
            pl.BlockSpec((1, C, 1), lambda i, j: (0, 0, 0)),   # resident consts
        ],
        out_specs=pl.BlockSpec((bn, C, bl), lambda i, j: (i, 0, j)),
        compiler_params=pltpu.CompilerParams(
            dimension_semantics=_dimension_semantics(grid)),
        cost_estimate=cost,
    )(x3, mean3, scale3)

    return out3.reshape(N, C, H, W)


def _reference(x, mean, std):
    return (x - mean[None, :, None, None]) / std[None, :, None, None]


if __name__ == "__main__":
    key = jax.random.PRNGKey(0)

    # --- Small shape matching the module spec (batch=2, channels=4, 16x16). ---
    N, C, H, W = 2, 4, 16, 16
    x = jax.random.normal(key, (N, C, H, W), dtype=jnp.float32)
    mean = jnp.array([0.10, 0.20, 0.30, 0.40], dtype=jnp.float32)
    std = jnp.array([0.50, 0.60, 0.70, 0.80], dtype=jnp.float32)

    out = jax.block_until_ready(normalize(x, mean, std))
    ref = _reference(x, mean, std)
    assert out.shape == (N, C, H, W)
    assert out.dtype == jnp.float32
    assert jnp.allclose(out, ref, atol=1e-5, rtol=1e-5)

    # --- Larger shape to exercise the multi-step grid (batch and lane chunks). ---
    key2 = jax.random.PRNGKey(1)
    x2 = jax.random.normal(key2, (4, 4, 64, 64), dtype=jnp.float32)
    out2 = jax.block_until_ready(
        normalize(x2, mean, std, target_block_bytes=64 * 1024))
    ref2 = _reference(x2, mean, std)
    assert jnp.allclose(out2, ref2, atol=1e-5, rtol=1e-5)

    print("KERNEL_OK")
</pallas_src>

<mosaic_0001>
module attributes {stable_mosaic.version = 11 : i64} {
  func.func @_normalize_kernel(%arg0: i32, %arg1: i32, %arg2: memref<2x4x256xf32, #tpu.memory_space<vmem>>, %arg3: memref<1x4x1xf32, #tpu.memory_space<vmem>>, %arg4: memref<1x4x1xf32, #tpu.memory_space<vmem>>, %arg5: memref<2x4x256xf32, #tpu.memory_space<vmem>>) attributes {dimension_semantics = [#tpu.dimension_semantics<parallel>, #tpu.dimension_semantics<parallel>], iteration_bounds = array<i64: 1, 1>, scalar_prefetch = 0 : i64, scratch_operands = 0 : i64, tpu.core_type = #tpu.core_type<tc>, window_params = [{transform_indices = @transform_0, window_bounds = array<i64: 2, 4, 256>}, {pipeline_mode = #tpu.pipeline_mode<synchronous>, transform_indices = @transform_1, window_bounds = array<i64: 1, 4, 1>}, {pipeline_mode = #tpu.pipeline_mode<synchronous>, transform_indices = @transform_2, window_bounds = array<i64: 1, 4, 1>}, {transform_indices = @transform_3, window_bounds = array<i64: 2, 4, 256>}]} {
    %c0 = arith.constant 0 : index
    %c0_0 = arith.constant 0 : index
    %c0_1 = arith.constant 0 : index
    %0 = vector.load %arg2[%c0, %c0_0, %c0_1] : memref<2x4x256xf32, #tpu.memory_space<vmem>>, vector<2x4x256xf32>
    %c0_2 = arith.constant 0 : index
    %c0_3 = arith.constant 0 : index
    %c0_4 = arith.constant 0 : index
    %1 = vector.load %arg3[%c0_2, %c0_3, %c0_4] : memref<1x4x1xf32, #tpu.memory_space<vmem>>, vector<1x4x1xf32>
    %2 = vector.broadcast %1 : vector<1x4x1xf32> to vector<2x4x256xf32>
    %3 = arith.subf %0, %2 : vector<2x4x256xf32>
    %c0_5 = arith.constant 0 : index
    %c0_6 = arith.constant 0 : index
    %c0_7 = arith.constant 0 : index
    %4 = vector.load %arg4[%c0_5, %c0_6, %c0_7] : memref<1x4x1xf32, #tpu.memory_space<vmem>>, vector<1x4x1xf32>
    %5 = vector.broadcast %4 : vector<1x4x1xf32> to vector<2x4x256xf32>
    %6 = arith.mulf %3, %5 : vector<2x4x256xf32>
    %c0_8 = arith.constant 0 : index
    %c0_9 = arith.constant 0 : index
    %c0_10 = arith.constant 0 : index
    %7 = vector.load %arg5[%c0_8, %c0_9, %c0_10] : memref<2x4x256xf32, #tpu.memory_space<vmem>>, vector<2x4x256xf32>
    tpu.vector_store %arg5[%c0_8, %c0_9, %c0_10], %6 {strides = array<i32>} : memref<2x4x256xf32, #tpu.memory_space<vmem>>, vector<2x4x256xf32>,
    return
  }
  func.func @transform_0(%arg0: i32, %arg1: i32) -> (i32, i32, i32) {
    %c0_i32 = arith.constant 0 : i32
    %c0_i32_0 = arith.constant 0 : i32
    return %arg0, %c0_i32, %arg1 : i32, i32, i32
  }
  func.func @transform_1(%arg0: i32, %arg1: i32) -> (i32, i32, i32) {
    %c0_i32 = arith.constant 0 : i32
    %c0_i32_0 = arith.constant 0 : i32
    %c0_i32_1 = arith.constant 0 : i32
    %c0_i32_2 = arith.constant 0 : i32
    return %c0_i32, %c0_i32_0, %c0_i32_1 : i32, i32, i32
  }
  func.func @transform_2(%arg0: i32, %arg1: i32) -> (i32, i32, i32) {
    %c0_i32 = arith.constant 0 : i32
    %c0_i32_0 = arith.constant 0 : i32
    %c0_i32_1 = arith.constant 0 : i32
    %c0_i32_2 = arith.constant 0 : i32
    return %c0_i32, %c0_i32_0, %c0_i32_1 : i32, i32, i32
  }
  func.func @transform_3(%arg0: i32, %arg1: i32) -> (i32, i32, i32) {
    %c0_i32 = arith.constant 0 : i32
    %c0_i32_0 = arith.constant 0 : i32
    return %arg0, %c0_i32, %arg1 : i32, i32, i32
  }
}

</mosaic_0001>

<llo_original>
// kernel: tpu_custom_call.1
$region0: #{tpu_custom_call.1}
  #allocation0 [shape = 'u32[]', space=smem, size = 0x4, offset = 0x4, fixed_abs, tag = 'smem constant byte address 0x4 - core index']
  #allocation1 [shape = 'u32[144,128]{1,0:T(1,128)}', space=vmem, size = 0x12000, scoped, tag = 'internal scratch']
  %s0 = inlined_call_operand.hbm [shape: f32[2,4,256], index: 0, kind: input, shape index: {}]
  %s1 = inlined_call_operand.vmem [shape: f32[1,4,1], index: 1, kind: input, shape index: {}]
  %s2 = inlined_call_operand.vmem [shape: f32[1,4,1], index: 2, kind: input, shape index: {}]
  %s3 = inlined_call_operand.hbm [shape: f32[2,4,256], index: 3, kind: output, shape index: {}]
  %s4 = sld [smem:[#allocation0]]
  $region26: #{tpu_custom_call.1} parent=0
    _
  %s6 = ssub.s32 1, %s4
  %s7 = scalar_select 0, %s6, %s4
  $region1: #{tpu_custom_call.1} parent=0
    #allocation2 [shape = 'u8[8192]{0}', space=vmem, size = 0x2000, scoped, tag = 'input window, operand 0, single buffered']
    #allocation3 [shape = 's32[1]{0}', space=sflag, size = 0x4, scoped, tag = 'scoped memory for tpu_custom_call.1']
    #allocation4 [shape = 's32[1]{0}', space=sflag, size = 0x4, scoped, tag = 'scoped memory for tpu_custom_call.1']
    #allocation5 [shape = 'u8[8192]{0}', space=vmem, size = 0x2000, scoped, tag = 'output window, operand 0, single buffered']
    %8 = vsyncpa [#allocation3], 0
    %9 = vsyncpa [#allocation4], 0
    // Predicated region
    $region2: #{tpu_custom_call.1} parent=1 // pred_check
      _
    $region3: #{tpu_custom_call.1} parent=1 // pred_check_branch
      %11 = sbr.rel (0) target = $region5
    $region4: #{tpu_custom_call.1} parent=1 // pred_region
      %s13 = ssub.s32 256, 256
      %14 = vsyncadd [#allocation3], %s13
      %s15 = sshll.u32 [#allocation2], 4
      %s16 = int_to_ptr.vmem [resolvable:$true] %s15
      %21 = dma.hbm_to_vmem [thread:$0]  %s0, 256, %s16, [#allocation3], 128, 128, 8
    $region5: #{tpu_custom_call.1} parent=1 // pred_fallthru
      _
    // Predicated region
    $region6: #{tpu_custom_call.1} parent=1 // pred_check
      _
    $region7: #{tpu_custom_call.1} parent=1 // pred_check_branch
      %23 = sbr.rel (0) target = $region9
    $region8: #{tpu_custom_call.1} parent=1 // pred_region
      _
    $region9: #{tpu_custom_call.1} parent=1 // pred_fallthru
      _
    // Predicated region
    $region10: #{tpu_custom_call.1} parent=1 // pred_check
      _
    $region11: #{tpu_custom_call.1} parent=1 // pred_check_branch
      %25 = sbr.rel (0) target = $region13
    $region12: #{tpu_custom_call.1} parent=1 // pred_region
      _
    $region13: #{tpu_custom_call.1} parent=1 // pred_fallthru
      _
    // Predicated region
    $region14: #{tpu_custom_call.1} parent=1 // pred_check
      _
    $region15: #{tpu_custom_call.1} parent=1 // pred_check_branch
      %27 = sbr.rel (0) target = $region17
    $region16: #{tpu_custom_call.1} parent=1 // pred_region
      %28 = dma.done [#allocation3], 256
    $region17: #{tpu_custom_call.1} parent=1 // pred_fallthru
      _
    %v29 = vld [vmem:[#allocation2] sm:$0xff]
    %v30 = vld [vmem:[#allocation2 + $0x8] sm:$0xff]
    %v31 = vld [vmem:[%s1] sm:$0xf]
    %33 = vset.pattern.permute.xlu0 0
    %34 = vperm.xlu0 %33, %v31
    %v35 = vpop.permute.xlu0 %34
    %v37 = vunpack.c.l.s4 839922192
    %v38 = vunpack.c.0.s8 %v37
    %v39 = vlaneseq
    %v40 = vshrl.u32 %v39, 7
    %v41 = vsub.s32 %v38, %v40
    %v42 = vrot.slane %v35, %v41
    %v44 = vsub.f32 %v29, %v42
    %v45 = vsub.f32 %v30, %v42
    %v46 = vld [vmem:[%s2] sm:$0xf]
    %48 = vset.pattern.permute.xlu0 0
    %49 = vperm.xlu0 %48, %v46
    %v50 = vpop.permute.xlu0 %49
    %v52 = vunpack.c.l.s4 839922192
    %v53 = vunpack.c.0.s8 %v52
    %v54 = vlaneseq
    %v55 = vshrl.u32 %v54, 7
    %v56 = vsub.s32 %v53, %v55
    %v57 = vrot.slane %v50, %v56
    %v59 = vmul.f32 %v44, %v57
    %v60 = vmul.f32 %v45, %v57
    %61 = vst [vmem:[#allocation5] sm:$0xff] %v59
    %62 = vst [vmem:[#allocation5 + $0x8] sm:$0xff] %v60
    // Predicated region
    $region18: #{tpu_custom_call.1} parent=1 // pred_check
      _
    $region19: #{tpu_custom_call.1} parent=1 // pred_check_branch
      %64 = sbr.rel (0) target = $region21
    $region20: #{tpu_custom_call.1} parent=1 // pred_region
      %s66 = ssub.s32 256, 256
      %67 = vsyncadd [#allocation4], %s66
      %s68 = sshll.u32 [#allocation5], 4
      %s69 = int_to_ptr.vmem [resolvable:$true] %s68
      %74 = dma.vmem_to_hbm [thread:$0]  %s69, 256, %s3, [#allocation4], 128, 128, 8
    $region21: #{tpu_custom_call.1} parent=1 // pred_fallthru
      _
    // Predicated region
    $region22: #{tpu_custom_call.1} parent=1 // pred_check
      _
    $region23: #{tpu_custom_call.1} parent=1 // pred_check_branch
      %76 = sbr.rel (0) target = $region25
    $region24: #{tpu_custom_call.1} parent=1 // pred_region
      %77 = dma.done [#allocation4], 256
    $region25: #{tpu_custom_call.1} parent=1 // pred_fallthru
      _
    %78 = vsyncpa [#allocation3], 1
    %79 = vsyncpa [#allocation4], 1

</llo_original>
